<compile_context>
chip_gen: v7x
topology: tpu7x:2x2x1
jax: 0.10.0
libtpu: 0.0.40
codegen_flags: <defaults>
</compile_context>

<pallas_src>
import functools

import jax
import jax.numpy as jnp
from jax.experimental import pallas as pl
from jax.experimental.pallas import tpu as pltpu


# ---------------- Pass 1: fused global-average-pool + excitation ----------------

def _pool_excite_kernel(x_ref, w1_ref, w2_ref, gate_ref, acc_ref, *, inv_hw):
    # x_ref:    (1, C, T)   one spatial tile of one batch row (native dtype)
    # w1_ref:   (C_r, C)    nn.Linear(C, C//r, bias=False).weight
    # w2_ref:   (C, C_r)    nn.Linear(C//r, C, bias=False).weight
    # gate_ref: (1, C, 1)   per-(batch, channel) sigmoid gate, f32 (output)
    # acc_ref:  (C, 1)      running f32 channel sum (VMEM scratch)
    k = pl.program_id(1)  # HW-tile index (reduction axis, last in grid)

    @pl.when(k == 0)
    def _():
        acc_ref[...] = jnp.zeros_like(acc_ref)

    # Cross-lane (XLU) reduction over the spatial tile; only the reduction path
    # is upcast to f32.  Channels stay on sublanes -> no relayout needed later.
    acc_ref[...] += jnp.sum(x_ref[0].astype(jnp.float32), axis=-1, keepdims=True)

    @pl.when(k == pl.num_programs(1) - 1)
    def _():
        y = acc_ref[...] * inv_hw                                    # (C, 1) mean
        h = jnp.maximum(
            jnp.dot(w1_ref[...].astype(jnp.float32), y,
                    preferred_element_type=jnp.float32), 0.0)        # (C_r, 1)
        g = jax.nn.sigmoid(
            jnp.dot(w2_ref[...].astype(jnp.float32), h,
                    preferred_element_type=jnp.float32))             # (C, 1)
        gate_ref[...] = g[None].astype(gate_ref.dtype)               # (1, C, 1)


# ----------------------------- Pass 2: streaming scale ---------------------------

def _scale_kernel(x_ref, s_ref, o_ref):
    # x_ref: (1, C, T)   s_ref: (1, C, 1) f32   o_ref: (1, C, T)
    # Native-dtype multiply, gate broadcast along lanes (cheap per-sublane bcast).
    o_ref[...] = x_ref[...] * s_ref[...].astype(x_ref.dtype)


# --------------------------------- wrapper ---------------------------------------

def _round_up(x, m):
    return ((x + m - 1) // m) * m


def _choose_hw_tile(C, HW, dtype_bytes, budget_bytes=2 * 1024 * 1024):
    """Lane tile: multiple of 128, sized so one (1, C, T) block stays small."""
    max_by_budget = max(128, (budget_bytes // max(1, C * dtype_bytes)) // 128 * 128)
    t = min(2048, max_by_budget, _round_up(HW, 128))
    return max(128, (t // 128) * 128)


def se_layer(x, w_fc1, w_fc2):
    """Squeeze-and-Excitation forward.

    x:      (B, C, H, W)  NCHW, like PyTorch.
    w_fc1:  (C // r, C)   nn.Linear(channel, channel // r, bias=False).weight
    w_fc2:  (C, C // r)   nn.Linear(channel // r, channel, bias=False).weight
    """
    B, C, H, W = x.shape
    HW = H * W
    C_r = w_fc1.shape[0]
    dtype_bytes = jnp.dtype(x.dtype).itemsize

    T = _choose_hw_tile(C, HW, dtype_bytes)
    HW_p = _round_up(HW, T)
    n_hw = HW_p // T

    x_flat = x.reshape(B, C, HW)
    if HW_p != HW:
        # Zero-pad the spatial axis to a lane-dense multiple of the tile.
        # Zeros do not perturb the pooled sum (we divide by the true HW);
        # padded outputs are sliced off at the end.
        x_flat = jnp.pad(x_flat, ((0, 0), (0, 0), (0, HW_p - HW)))

    # ---- Pass 1: fused pool + excitation -> per-channel sigmoid gate ----
    pool_kernel = functools.partial(_pool_excite_kernel, inv_hw=1.0 / float(HW))
    pool_cost = pl.CostEstimate(
        flops=B * (C * HW_p + 4 * C * C_r),
        transcendentals=B * C,
        bytes_accessed=B * C * HW_p * dtype_bytes + B * C * 4
        + 2 * C * C_r * dtype_bytes,
    )
    gate = pl.pallas_call(
        pool_kernel,
        out_shape=jax.ShapeDtypeStruct((B, C, 1), jnp.float32),
        grid_spec=pltpu.PrefetchScalarGridSpec(
            num_scalar_prefetch=0,
            grid=(B, n_hw),  # reduction (HW) axis last
            in_specs=[
                pl.BlockSpec((1, C, T), lambda b, k: (b, 0, k)),
                pl.BlockSpec((C_r, C), lambda b, k: (0, 0)),   # fetched once
                pl.BlockSpec((C, C_r), lambda b, k: (0, 0)),   # fetched once
            ],
            out_specs=pl.BlockSpec((1, C, 1), lambda b, k: (b, 0, 0)),
            scratch_shapes=[pltpu.VMEM((C, 1), jnp.float32)],
        ),
        compiler_params=pltpu.CompilerParams(
            dimension_semantics=("parallel", "arbitrary")),
        cost_estimate=pool_cost,
    )(x_flat, w_fc1, w_fc2)

    # ---- Pass 2: streaming, lane-dense scale (memory-bound) ----
    scale_cost = pl.CostEstimate(
        flops=B * C * HW_p,
        transcendentals=0,
        bytes_accessed=2 * B * C * HW_p * dtype_bytes + B * C * 4,
    )
    out_flat = pl.pallas_call(
        _scale_kernel,
        out_shape=jax.ShapeDtypeStruct((B, C, HW_p), x.dtype),
        grid_spec=pltpu.PrefetchScalarGridSpec(
            num_scalar_prefetch=0,
            grid=(B, n_hw),
            in_specs=[
                pl.BlockSpec((1, C, T), lambda b, k: (b, 0, k)),
                pl.BlockSpec((1, C, 1), lambda b, k: (b, 0, 0)),
            ],
            out_specs=pl.BlockSpec((1, C, T), lambda b, k: (b, 0, k)),
        ),
        compiler_params=pltpu.CompilerParams(
            dimension_semantics=("parallel", "parallel")),
        cost_estimate=scale_cost,
    )(x_flat, gate)

    if HW_p != HW:
        out_flat = out_flat[:, :, :HW]
    return out_flat.reshape(B, C, H, W)


def _reference(x, w_fc1, w_fc2):
    # Pure-JAX reference mirroring the PyTorch forward exactly.
    y = jnp.mean(x, axis=(2, 3))                 # AdaptiveAvgPool2d(1) + view(b, c)
    y = jnp.maximum(y @ w_fc1.T, 0.0)            # Linear(c, c//r, bias=False) + ReLU
    y = jax.nn.sigmoid(y @ w_fc2.T)              # Linear(c//r, c, bias=False) + Sigmoid
    return x * y[:, :, None, None]


if __name__ == "__main__":
    key = jax.random.PRNGKey(0)
    B, C, H, W = 2, 64, 16, 16          # HW = 256 -> lane-dense (multiple of 128)
    reduction = 16
    C_r = C // reduction

    kx, k1, k2 = jax.random.split(key, 3)
    x = jax.random.normal(kx, (B, C, H, W), dtype=jnp.float32)
    # Deterministic synthetic weights with nn.Linear shapes (out_features, in_features).
    w_fc1 = jax.random.normal(k1, (C_r, C), dtype=jnp.float32) * 0.1
    w_fc2 = jax.random.normal(k2, (C, C_r), dtype=jnp.float32) * 0.1

    out = jax.block_until_ready(se_layer(x, w_fc1, w_fc2))

    ref = _reference(x, w_fc1, w_fc2)
    assert out.shape == (B, C, H, W)
    assert jnp.allclose(out, ref, atol=1e-5, rtol=1e-5)

    print("KERNEL_OK")
</pallas_src>

<mosaic_0001>
module attributes {stable_mosaic.version = 11 : i64} {
  func.func @_pool_excite_kernel(%arg0: i32, %arg1: i32, %arg2: memref<1x64x256xf32, #tpu.memory_space<vmem>>, %arg3: memref<4x64xf32, #tpu.memory_space<vmem>>, %arg4: memref<64x4xf32, #tpu.memory_space<vmem>>, %arg5: memref<1x64x1xf32, #tpu.memory_space<vmem>>, %arg6: memref<64x1xf32, #tpu.memory_space<vmem>>) attributes {dimension_semantics = [#tpu.dimension_semantics<parallel>, #tpu.dimension_semantics<arbitrary>], iteration_bounds = array<i64: 2, 1>, scalar_prefetch = 0 : i64, scratch_operands = 1 : i64, tpu.core_type = #tpu.core_type<tc>, window_params = [{transform_indices = @transform_0, window_bounds = array<i64: 1, 64, 256>}, {pipeline_mode = #tpu.pipeline_mode<synchronous>, transform_indices = @transform_1, window_bounds = array<i64: 4, 64>}, {pipeline_mode = #tpu.pipeline_mode<synchronous>, transform_indices = @transform_2, window_bounds = array<i64: 64, 4>}, {transform_indices = @transform_3, window_bounds = array<i64: 1, 64, 1>}]} {
    %c0_i32 = arith.constant 0 : i32
    %0 = arith.cmpi eq, %arg1, %c0_i32 : i32
    %1 = arith.extui %0 : i1 to i32
    %c0_i32_0 = arith.constant 0 : i32
    %2 = arith.cmpi ne, %1, %c0_i32_0 : i32
    scf.if %2 {
      %cst_9 = arith.constant 0.000000e+00 : f32
      %13 = vector.broadcast %cst_9 : f32 to vector<64x1xf32>
      %c0_10 = arith.constant 0 : index
      %c0_11 = arith.constant 0 : index
      %14 = vector.load %arg6[%c0_10, %c0_11] : memref<64x1xf32, #tpu.memory_space<vmem>>, vector<64x1xf32>
      tpu.vector_store %arg6[%c0_10, %c0_11], %13 {strides = array<i32>} : memref<64x1xf32, #tpu.memory_space<vmem>>, vector<64x1xf32>,
    } else {
    }
    %c0 = arith.constant 0 : index
    %c0_1 = arith.constant 0 : index
    %3 = vector.load %arg6[%c0, %c0_1] : memref<64x1xf32, #tpu.memory_space<vmem>>, vector<64x1xf32>
    %c0_2 = arith.constant 0 : index
    %c0_3 = arith.constant 0 : index
    %c0_4 = arith.constant 0 : index
    %4 = vector.load %arg2[%c0_2, %c0_3, %c0_4] : memref<1x64x256xf32, #tpu.memory_space<vmem>>, vector<1x64x256xf32>
    %5 = vector.shape_cast %4 : vector<1x64x256xf32> to vector<64x256xf32>
    %cst = arith.constant dense<0.000000e+00> : vector<64xf32>
    %6 = vector.multi_reduction <add>, %5, %cst [1] : vector<64x256xf32> to vector<64xf32>
    %7 = vector.shape_cast %6 : vector<64xf32> to vector<64x1xf32>
    %8 = arith.addf %3, %7 : vector<64x1xf32>
    %c0_5 = arith.constant 0 : index
    %c0_6 = arith.constant 0 : index
    %9 = vector.load %arg6[%c0_5, %c0_6] : memref<64x1xf32, #tpu.memory_space<vmem>>, vector<64x1xf32>
    tpu.vector_store %arg6[%c0_5, %c0_6], %8 {strides = array<i32>} : memref<64x1xf32, #tpu.memory_space<vmem>>, vector<64x1xf32>,
    %c0_i32_7 = arith.constant 0 : i32
    %10 = arith.cmpi eq, %arg1, %c0_i32_7 : i32
    %11 = arith.extui %10 : i1 to i32
    %c0_i32_8 = arith.constant 0 : i32
    %12 = arith.cmpi ne, %11, %c0_i32_8 : i32
    scf.if %12 {
      %c0_9 = arith.constant 0 : index
      %c0_10 = arith.constant 0 : index
      %13 = vector.load %arg6[%c0_9, %c0_10] : memref<64x1xf32, #tpu.memory_space<vmem>>, vector<64x1xf32>
      %cst_11 = arith.constant 3.906250e-03 : f32
      %14 = vector.broadcast %cst_11 : f32 to vector<64x1xf32>
      %15 = arith.mulf %13, %14 : vector<64x1xf32>
      %c0_12 = arith.constant 0 : index
      %c0_13 = arith.constant 0 : index
      %16 = vector.load %arg3[%c0_12, %c0_13] : memref<4x64xf32, #tpu.memory_space<vmem>>, vector<4x64xf32>
      %cst_14 = arith.constant dense<0.000000e+00> : vector<4x1xf32>
      %17 = tpu.matmul %16, %15, %cst_14 {dimension_numbers = #tpu.dot_dimension_numbers<[1], [0], [0], [1], [0, 0, 1, 1], [], []>} : vector<4x64xf32>, vector<64x1xf32>, vector<4x1xf32> -> vector<4x1xf32>
      %cst_15 = arith.constant 0.000000e+00 : f32
      %18 = vector.broadcast %cst_15 : f32 to vector<4x1xf32>
      %19 = arith.maximumf %17, %18 : vector<4x1xf32>
      %c0_16 = arith.constant 0 : index
      %c0_17 = arith.constant 0 : index
      %20 = vector.load %arg4[%c0_16, %c0_17] : memref<64x4xf32, #tpu.memory_space<vmem>>, vector<64x4xf32>
      %cst_18 = arith.constant dense<0.000000e+00> : vector<64x1xf32>
      %21 = tpu.matmul %20, %19, %cst_18 {dimension_numbers = #tpu.dot_dimension_numbers<[1], [0], [0], [1], [0, 0, 1, 1], [], []>} : vector<64x4xf32>, vector<4x1xf32>, vector<64x1xf32> -> vector<64x1xf32>
      %22 = arith.negf %21 : vector<64x1xf32>
      %23 = math.exp %22 : vector<64x1xf32>
      %cst_19 = arith.constant 1.000000e+00 : f32
      %24 = vector.broadcast %cst_19 : f32 to vector<64x1xf32>
      %25 = arith.addf %24, %23 : vector<64x1xf32>
      %26 = arith.divf %24, %25 : vector<64x1xf32>
      %27 = vector.shape_cast %26 : vector<64x1xf32> to vector<1x64x1xf32>
      %c0_20 = arith.constant 0 : index
      %c0_21 = arith.constant 0 : index
      %c0_22 = arith.constant 0 : index
      %28 = vector.load %arg5[%c0_20, %c0_21, %c0_22] : memref<1x64x1xf32, #tpu.memory_space<vmem>>, vector<1x64x1xf32>
      tpu.vector_store %arg5[%c0_20, %c0_21, %c0_22], %27 {strides = array<i32>} : memref<1x64x1xf32, #tpu.memory_space<vmem>>, vector<1x64x1xf32>,
    } else {
    }
    return
  }
  func.func @transform_0(%arg0: i32, %arg1: i32) -> (i32, i32, i32) {
    %c0_i32 = arith.constant 0 : i32
    %c0_i32_0 = arith.constant 0 : i32
    return %arg0, %c0_i32, %arg1 : i32, i32, i32
  }
  func.func @transform_1(%arg0: i32, %arg1: i32) -> (i32, i32) {
    %c0_i32 = arith.constant 0 : i32
    %c0_i32_0 = arith.constant 0 : i32
    %c0_i32_1 = arith.constant 0 : i32
    return %c0_i32, %c0_i32_0 : i32, i32
  }
  func.func @transform_2(%arg0: i32, %arg1: i32) -> (i32, i32) {
    %c0_i32 = arith.constant 0 : i32
    %c0_i32_0 = arith.constant 0 : i32
    %c0_i32_1 = arith.constant 0 : i32
    return %c0_i32, %c0_i32_0 : i32, i32
  }
  func.func @transform_3(%arg0: i32, %arg1: i32) -> (i32, i32, i32) {
    %c0_i32 = arith.constant 0 : i32
    %c0_i32_0 = arith.constant 0 : i32
    %c0_i32_1 = arith.constant 0 : i32
    return %arg0, %c0_i32, %c0_i32_0 : i32, i32, i32
  }
}

</mosaic_0001>

<llo_original>
// kernel: tpu_custom_call.1
$region0: #{tpu_custom_call.1}
  #allocation0 [shape = 'u32[]', space=smem, size = 0x4, offset = 0x4, fixed_abs, tag = 'smem constant byte address 0x4 - core index']
  #allocation1 [shape = 'u32[144,128]{1,0:T(1,128)}', space=vmem, size = 0x12000, scoped, tag = 'internal scratch']
  #allocation2 [shape = 'f32[64,1]{1,0:T(8,128)}', space=vmem, size = 0x8000, scoped, tag = 'scratch operand']
  %s0 = inlined_call_operand.hbm [shape: f32[2,64,256], index: 0, kind: input, shape index: {}]
  %s1 = inlined_call_operand.vmem [shape: f32[4,64], index: 1, kind: input, shape index: {}]
  %s2 = inlined_call_operand.vmem [shape: f32[64,4], index: 2, kind: input, shape index: {}]
  %s3 = inlined_call_operand.vmem [shape: f32[2,64,1], index: 3, kind: output, shape index: {}]
  %s4 = sld [smem:[#allocation0]]
  $region57: #{tpu_custom_call.1} parent=0
    _
  %s6 = ssub.s32 1, %s4
  %s7 = scalar_select 0, %s6, %s4
  $region1: #{tpu_custom_call.1} parent=0
    #allocation3 [shape = 'u8[131072]{0}', space=vmem, size = 0x20000, scoped, tag = 'input window, operand 0']
    #allocation4 [shape = 's32[2]{0}', space=sflag, size = 0x8, scoped, tag = 'scoped memory for tpu_custom_call.1']
    %8 = vsyncpa [#allocation4], 0
    %s9 = scalar_lea.sflag [#allocation4], 1
    %10 = vsyncpa %s9, 0
    loop: start=0, step=1, limit=4
    $region2: #{tpu_custom_call.1} parent=1 // loop_pre_header
      _
    $region3: #{tpu_custom_call.1} parent=1 // loop_header
      %s12 = sphi 0, %s16
      %p13 = scmp.ge.s32.totalorder %s12, 4
      %s19 = sphi 0, %s31
      %s20 = sphi 0, %s27
      %s21 = sphi 0, %s19
      %s22 = sphi 0, %s20
      %s23 = sphi 0, %s21
      %s24 = sphi 0, %s22
      %s36 = sphi 0, %s38
      %s39 = sphi 0, %s36
      %s40 = sphi 0, %s39
      %s56 = sphi 0, %s40
      %s60 = sphi 0, %s60
      %s62 = sphi 0, %s60
      %s63 = sphi 0, %s62
      %s77 = sphi 0, %s63
      %s81 = sphi 0, %s81
      %s83 = sphi 0, %s81
      %s84 = sphi 0, %s83
      %s98 = sphi 0, %s84
      %s104 = sphi 0, %s106
      %s107 = sphi 0, %s104
      %s108 = sphi 0, %s107
      %s124 = sphi 0, %s108
    $region4: #{tpu_custom_call.1} parent=1 // loop_header_branch
      %15 = sbr.rel (%p13) target = $region8
    $region5: #{tpu_custom_call.1} parent=1 // loop_body
      %s17 = ssub.s32 %s12, 1
      %s18 = ssub.s32 %s12, 2
      %s25 = sadd.s32 1, %s20
      %p26 = scmp.ge.s32.totalorder %s25, 1
      %s27 = scalar_select %p26, 0, %s25
      %s28 = sadd.s32 1, %s19
      %s29 = scalar_select %p26, %s28, %s19
      %p30 = scmp.ge.s32.totalorder %s29, 2
      %s31 = scalar_select %p30, 0, %s29
      %s32 = ssub.s32 %s19, %s31
      %s33 = ssub.s32 %s20, %s27
      %s34 = sor.u32 %s32, %s33
      %p35 = scmp.eq.s32.totalorder %s34, 0
      %s37 = sadd.s32 %s36, 1
      %s38 = scalar_select %p35, %s36, %s37
      %p41 = pneg %p35
      %p42 = scmp.eq.s32.totalorder %s12, 1
      %p43 = por %p41, %p42
      %p44 = scmp.ne.s32.totalorder %s36, %s39
      %p45 = scmp.eq.s32.totalorder %s12, 0
      %p46 = por %p44, %p45
      %p47 = scmp.ne.s32.totalorder %s36, %s39
      %p48 = scmp.eq.s32.totalorder %s17, 1
      %p49 = por %p47, %p48
      %p50 = scmp.ne.s32.totalorder %s39, %s40
      %p51 = scmp.eq.s32.totalorder %s17, 0
      %p52 = por %p50, %p51
      %p53 = scmp.ne.s32.totalorder %s39, %s40
      %p54 = scmp.eq.s32.totalorder %s18, 1
      %p55 = por %p53, %p54
      %p57 = scmp.ne.s32.totalorder %s40, %s56
      %p58 = scmp.eq.s32.totalorder %s18, 0
      %p59 = por %p57, %p58
      %s61 = sadd.s32 %s60, 1
      %p64 = scmp.eq.s32.totalorder %s12, 1
      %p65 = scmp.ne.s32.totalorder %s60, %s62
      %p66 = scmp.eq.s32.totalorder %s12, 0
      %p67 = por %p65, %p66
      %p68 = scmp.ne.s32.totalorder %s60, %s62
      %p69 = scmp.eq.s32.totalorder %s17, 1
      %p70 = por %p68, %p69
      %p71 = scmp.ne.s32.totalorder %s62, %s63
      %p72 = scmp.eq.s32.totalorder %s17, 0
      %p73 = por %p71, %p72
      %p74 = scmp.ne.s32.totalorder %s62, %s63
      %p75 = scmp.eq.s32.totalorder %s18, 1
      %p76 = por %p74, %p75
      %p78 = scmp.ne.s32.totalorder %s63, %s77
      %p79 = scmp.eq.s32.totalorder %s18, 0
      %p80 = por %p78, %p79
      %s82 = sadd.s32 %s81, 1
      %p85 = scmp.eq.s32.totalorder %s12, 1
      %p86 = scmp.ne.s32.totalorder %s81, %s83
      %p87 = scmp.eq.s32.totalorder %s12, 0
      %p88 = por %p86, %p87
      %p89 = scmp.ne.s32.totalorder %s81, %s83
      %p90 = scmp.eq.s32.totalorder %s17, 1
      %p91 = por %p89, %p90
      %p92 = scmp.ne.s32.totalorder %s83, %s84
      %p93 = scmp.eq.s32.totalorder %s17, 0
      %p94 = por %p92, %p93
      %p95 = scmp.ne.s32.totalorder %s83, %s84
      %p96 = scmp.eq.s32.totalorder %s18, 1
      %p97 = por %p95, %p96
      %p99 = scmp.ne.s32.totalorder %s84, %s98
      %p100 = scmp.eq.s32.totalorder %s18, 0
      %p101 = por %p99, %p100
      %s102 = ssub.s32 %s19, %s31
      %p103 = scmp.eq.s32.totalorder %s102, 0
      %s105 = sadd.s32 %s104, 1
      %s106 = scalar_select %p103, %s104, %s105
      %p109 = pneg %p103
      %p110 = scmp.eq.s32.totalorder %s12, 1
      %p111 = por %p109, %p110
      %p112 = scmp.ne.s32.totalorder %s104, %s107
      %p113 = scmp.eq.s32.totalorder %s12, 0
      %p114 = por %p112, %p113
      %p115 = scmp.ne.s32.totalorder %s104, %s107
      %p116 = scmp.eq.s32.totalorder %s17, 1
      %p117 = por %p115, %p116
      %p118 = scmp.ne.s32.totalorder %s107, %s108
      %p119 = scmp.eq.s32.totalorder %s17, 0
      %p120 = por %p118, %p119
      %p121 = scmp.ne.s32.totalorder %s107, %s108
      %p122 = scmp.eq.s32.totalorder %s18, 1
      %p123 = por %p121, %p122
      %p125 = scmp.ne.s32.totalorder %s108, %s124
      %p126 = scmp.eq.s32.totalorder %s18, 0
      %p127 = por %p125, %p126
      %p128 = scmp.le.s32.totalorder 1, %s12
      %p129 = scmp.lt.s32.totalorder %s12, 3
      %p130 = pnand %p128, %p129
      %p131 = pneg %p130
      // Predicated region
      $region9: #{tpu_custom_call.1} parent=5 // pred_check
        _
      $region10: #{tpu_custom_call.1} parent=5 // pred_check_branch
        %133 = sbr.rel (%p130) target = $region12
      $region11: #{tpu_custom_call.1} parent=5 // pred_region
        %s134 = ssub.s32 %s12, 1
        // Predicated region
        $region13: #{tpu_custom_call.1} parent=11 // pred_check
          %p135 = pneg %p73
        $region14: #{tpu_custom_call.1} parent=11 // pred_check_branch
          %137 = sbr.rel (%p135) target = $region16
        $region15: #{tpu_custom_call.1} parent=11 // pred_region
          _
        $region16: #{tpu_custom_call.1} parent=11 // pred_fallthru
          _
        // Predicated region
        $region17: #{tpu_custom_call.1} parent=11 // pred_check
          %p138 = pneg %p94
        $region18: #{tpu_custom_call.1} parent=11 // pred_check_branch
          %140 = sbr.rel (%p138) target = $region20
        $region19: #{tpu_custom_call.1} parent=11 // pred_region
          _
        $region20: #{tpu_custom_call.1} parent=11 // pred_fallthru
          _
      $region12: #{tpu_custom_call.1} parent=5 // pred_fallthru
        _
      %p141 = scmp.lt.s32.totalorder %s12, 2
      // Predicated region
      $region21: #{tpu_custom_call.1} parent=5 // pred_check
        %p142 = pneg %p141
      $region22: #{tpu_custom_call.1} parent=5 // pred_check_branch
        %144 = sbr.rel (%p142) target = $region24
      $region23: #{tpu_custom_call.1} parent=5 // pred_region
        // Predicated region
        $region25: #{tpu_custom_call.1} parent=23 // pred_check
          %p145 = pneg %p46
        $region26: #{tpu_custom_call.1} parent=23 // pred_check_branch
          %147 = sbr.rel (%p145) target = $region28
        $region27: #{tpu_custom_call.1} parent=23 // pred_region
          %s148 = sand.u32 %s36, 1
          %s149 = scalar_lea.sflag [#allocation4], %s148
          %s150 = sand.u32 %s36, 1
          %s151 = smul.addr %s150, 128
          %s152 = scalar_lea.vmem [#allocation3], %s151
          %s153 = smul.u32 2, %s20
          %s155 = ssub.s32 2048, 2048
          %156 = vsyncadd %s149, %s155
          %s157 = smul.addr %s19, 16
          %s158 = sadd.s32 %s153, %s157
          %s159 = smul.addr %s158, 128
          %s160 = scalar_lea.hbm %s0, %s159
          %s161 = sshll.u32 %s152, 4
          %s162 = int_to_ptr.vmem [resolvable:$true] %s161
          %167 = dma.hbm_to_vmem [thread:$0]  %s160, 2048, %s162, %s149, 256, 256, 16
        $region28: #{tpu_custom_call.1} parent=23 // pred_fallthru
          _
      $region24: #{tpu_custom_call.1} parent=5 // pred_fallthru
        _
      %p168 = scmp.le.s32.totalorder 1, %s12
      %p169 = scmp.lt.s32.totalorder %s12, 3
      %p170 = pnand %p168, %p169
      %p171 = pneg %p170
      // Predicated region
      $region29: #{tpu_custom_call.1} parent=5 // pred_check
        _
      $region30: #{tpu_custom_call.1} parent=5 // pred_check_branch
        %173 = sbr.rel (%p170) target = $region32
      $region31: #{tpu_custom_call.1} parent=5 // pred_region
        %s174 = ssub.s32 %s12, 1
        %s175 = sand.u32 %s39, 1
        %s176 = scalar_lea.sflag [#allocation4], %s175
        %s177 = sand.u32 %s39, 1
        %s178 = smul.addr %s177, 128
        %s179 = scalar_lea.vmem [#allocation3], %s178
        // Predicated region
        $region33: #{tpu_custom_call.1} parent=31 // pred_check
          %p180 = pneg %p52
        $region34: #{tpu_custom_call.1} parent=31 // pred_check_branch
          %182 = sbr.rel (%p180) target = $region36
        $region35: #{tpu_custom_call.1} parent=31 // pred_region
          %183 = dma.done %s176, 2048
        $region36: #{tpu_custom_call.1} parent=31 // pred_fallthru
          _
        %s184 = sand.u32 %s39, 1
        %s185 = scalar_lea.sflag [#allocation4], %s184
        %s186 = sand.u32 %s39, 1
        %s187 = smul.addr %s186, 128
        %s188 = scalar_lea.vmem [#allocation3], %s187
        %p189 = pneg %p52
        %p190 = pneg %p49
        %p191 = pneg %p73
        %p192 = pneg %p70
        %p193 = pneg %p94
        %p194 = pneg %p91
        %p195 = pneg %p120
        %p196 = pneg %p117
        %p197 = scmp.lt.s32.totalorder %s21, 1
        %s198 = scalar_select %p197, %s21, 1
        %s199 = smul.addr %s198, 8
        %s200 = smul.addr %s199, 8
        %s201 = scalar_lea.vmem %s3, %s200
        %s202 = smul.u32 2, %s22
        %p203 = scmp.lt.s32.totalorder %s21, 1
        %s204 = scalar_select %p203, %s21, 1
        %s205 = smul.addr %s204, 8
        %s206 = smul.addr %s205, 8
        %s207 = scalar_lea.vmem %s3, %s206
        %p208 = scmp.eq.s32.totalorder %s22, 0
        // Predicated region
        $region37: #{tpu_custom_call.1} parent=31 // pred_check
          %p209 = pneg %p208
        $region38: #{tpu_custom_call.1} parent=31 // pred_check_branch
          %211 = sbr.rel (%p209) target = $region40
        $region39: #{tpu_custom_call.1} parent=31 // pred_region
          %vm212 = vcmask 7168
          %213 = vst.msk [vmem:[#allocation2] sm:$0xff] %vm212, 0.0
          %214 = vst.msk [vmem:[#allocation2 + $0x8] sm:$0xff] %vm212, 0.0
          %215 = vst.msk [vmem:[#allocation2 + $0x10] sm:$0xff] %vm212, 0.0
          %216 = vst.msk [vmem:[#allocation2 + $0x18] sm:$0xff] %vm212, 0.0
          %217 = vst.msk [vmem:[#allocation2 + $0x20] sm:$0xff] %vm212, 0.0
          %218 = vst.msk [vmem:[#allocation2 + $0x28] sm:$0xff] %vm212, 0.0
          %219 = vst.msk [vmem:[#allocation2 + $0x30] sm:$0xff] %vm212, 0.0
          %220 = vst.msk [vmem:[#allocation2 + $0x38] sm:$0xff] %vm212, 0.0
        $region40: #{tpu_custom_call.1} parent=31 // pred_fallthru
          _
        %v221 = vld [vmem:[#allocation2] sm:$0xff]
        %v222 = vld [vmem:[#allocation2 + $0x8] sm:$0xff]
        %v223 = vld [vmem:[#allocation2 + $0x10] sm:$0xff]
        %v224 = vld [vmem:[#allocation2 + $0x18] sm:$0xff]
        %v225 = vld [vmem:[#allocation2 + $0x20] sm:$0xff]
        %v226 = vld [vmem:[#allocation2 + $0x28] sm:$0xff]
        %v227 = vld [vmem:[#allocation2 + $0x30] sm:$0xff]
        %v228 = vld [vmem:[#allocation2 + $0x38] sm:$0xff]
        %v229 = vld [vmem:[%s179] sm:$0xff]
        %v230 = vld [vmem:[%s179 + $0x8] sm:$0xff]
        %v231 = vld [vmem:[%s179 + $0x10] sm:$0xff]
        %v232 = vld [vmem:[%s179 + $0x18] sm:$0xff]
        %v233 = vld [vmem:[%s179 + $0x20] sm:$0xff]
        %v234 = vld [vmem:[%s179 + $0x28] sm:$0xff]
        %v235 = vld [vmem:[%s179 + $0x30] sm:$0xff]
        %v236 = vld [vmem:[%s179 + $0x38] sm:$0xff]
        %v237 = vld [vmem:[%s179 + $0x40] sm:$0xff]
        %v238 = vld [vmem:[%s179 + $0x48] sm:$0xff]
        %v239 = vld [vmem:[%s179 + $0x50] sm:$0xff]
        %v240 = vld [vmem:[%s179 + $0x58] sm:$0xff]
        %v241 = vld [vmem:[%s179 + $0x60] sm:$0xff]
        %v242 = vld [vmem:[%s179 + $0x68] sm:$0xff]
        %v243 = vld [vmem:[%s179 + $0x70] sm:$0xff]
        %v244 = vld [vmem:[%s179 + $0x78] sm:$0xff]
        %v245 = vadd.f32 %v229, %v230
        %246 = vadd.xlane.f32.xlu0 %v245
        %v247 = vpop.xlane.xlu0 %246
        %v248 = vadd.f32 %v231, %v232
        %249 = vadd.xlane.f32.xlu0 %v248
        %v250 = vpop.xlane.xlu0 %249
        %v251 = vadd.f32 %v233, %v234
        %252 = vadd.xlane.f32.xlu0 %v251
        %v253 = vpop.xlane.xlu0 %252
        %v254 = vadd.f32 %v235, %v236
        %255 = vadd.xlane.f32.xlu0 %v254
        %v256 = vpop.xlane.xlu0 %255
        %v257 = vadd.f32 %v237, %v238
        %258 = vadd.xlane.f32.xlu0 %v257
        %v259 = vpop.xlane.xlu0 %258
        %v260 = vadd.f32 %v239, %v240
        %261 = vadd.xlane.f32.xlu0 %v260
        %v262 = vpop.xlane.xlu0 %261
        %v263 = vadd.f32 %v241, %v242
        %264 = vadd.xlane.f32.xlu0 %v263
        %v265 = vpop.xlane.xlu0 %264
        %v266 = vadd.f32 %v243, %v244
        %267 = vadd.xlane.f32.xlu0 %v266
        %v268 = vpop.xlane.xlu0 %267
        %v269 = vadd.f32 %v221, %v247
        %v270 = vadd.f32 %v222, %v250
        %v271 = vadd.f32 %v223, %v253
        %v272 = vadd.f32 %v224, %v256
        %v273 = vadd.f32 %v225, %v259
        %v274 = vadd.f32 %v226, %v262
        %v275 = vadd.f32 %v227, %v265
        %v276 = vadd.f32 %v228, %v268
        %vm277 = vcmask 7168
        %278 = vst.msk [vmem:[#allocation2] sm:$0xff] %vm277, %v269
        %279 = vst.msk [vmem:[#allocation2 + $0x8] sm:$0xff] %vm277, %v270
        %280 = vst.msk [vmem:[#allocation2 + $0x10] sm:$0xff] %vm277, %v271
        %281 = vst.msk [vmem:[#allocation2 + $0x18] sm:$0xff] %vm277, %v272
        %282 = vst.msk [vmem:[#allocation2 + $0x20] sm:$0xff] %vm277, %v273
        %283 = vst.msk [vmem:[#allocation2 + $0x28] sm:$0xff] %vm277, %v274
        %284 = vst.msk [vmem:[#allocation2 + $0x30] sm:$0xff] %vm277, %v275
        %285 = vst.msk [vmem:[#allocation2 + $0x38] sm:$0xff] %vm277, %v276
        // Predicated region
        $region41: #{tpu_custom_call.1} parent=31 // pred_check
          %p286 = pneg %p208
        $region42: #{tpu_custom_call.1} parent=31 // pred_check_branch
          %288 = sbr.rel (%p286) target = $region44
        $region43: #{tpu_custom_call.1} parent=31 // pred_region
          %v289 = vld [vmem:[#allocation2] sm:$0xff]
          %v290 = vld [vmem:[#allocation2 + $0x8] sm:$0xff]
          %v291 = vld [vmem:[#allocation2 + $0x10] sm:$0xff]
          %v292 = vld [vmem:[#allocation2 + $0x18] sm:$0xff]
          %v293 = vld [vmem:[#allocation2 + $0x20] sm:$0xff]
          %v294 = vld [vmem:[#allocation2 + $0x28] sm:$0xff]
          %v295 = vld [vmem:[#allocation2 + $0x30] sm:$0xff]
          %v296 = vld [vmem:[#allocation2 + $0x38] sm:$0xff]
          %v297 = vmul.f32 %v289, 0.00390625
          %v298 = vmul.f32 %v290, 0.00390625
          %v299 = vmul.f32 %v291, 0.00390625
          %v300 = vmul.f32 %v292, 0.00390625
          %v301 = vmul.f32 %v293, 0.00390625
          %v302 = vmul.f32 %v294, 0.00390625
          %v303 = vmul.f32 %v295, 0.00390625
          %v304 = vmul.f32 %v296, 0.00390625
          %v305 = vld [vmem:[%s1] sm:$0xf]
          %vm306 = vcmask 523264
          %v308 = vsel %vm306, %v305, 0
          %310 = vmatprep.subr.mxu0 0.0
          %311 = vmatpush1.msra.mxu0 %v297
          %312 = vmatprep.subr.mxu0 0.0
          %313 = vmatpush1.msra.mxu0 %v298
          %314 = vmatprep.subr.mxu0 0.0
          %315 = vmatpush1.msra.mxu0 %v299
          %316 = vmatprep.subr.mxu0 0.0
          %317 = vmatpush1.msra.mxu0 %v300
          %318 = vmatprep.subr.mxu0 0.0
          %319 = vmatpush1.msra.mxu0 %v301
          %320 = vmatprep.subr.mxu0 0.0
          %321 = vmatpush1.msra.mxu0 %v302
          %322 = vmatprep.subr.mxu0 0.0
          %323 = vmatpush1.msra.mxu0 %v303
          %324 = vmatprep.subr.mxu0 0.0
          %325 = vmatpush1.msra.mxu0 %v304
          %326 = vmatprep.subr.mxu0 0.0
          %327 = vmatpush1.msra.mxu0 0.0
          %328 = vmatprep.subr.mxu0 0.0
          %329 = vmatpush1.msra.mxu0 0.0
          %330 = vmatprep.subr.mxu0 0.0
          %331 = vmatpush1.msra.mxu0 0.0
          %332 = vmatprep.subr.mxu0 0.0
          %333 = vmatpush1.msra.mxu0 0.0
          %334 = vmatprep.subr.mxu0 0.0
          %335 = vmatpush1.msra.mxu0 0.0
          %336 = vmatprep.subr.mxu0 0.0
          %337 = vmatpush1.msra.mxu0 0.0
          %338 = vmatprep.subr.mxu0 0.0
          %339 = vmatpush1.msra.mxu0 0.0
          %340 = vmatprep.subr.mxu0 0.0
          %341 = vmatpush1.msra.mxu0 0.0
          %342 = vmatprep.subr.mxu0 0.0
          %343 = vmatpush1.msra.mxu0 0.0
          %344 = vmatprep.subr.mxu0 0.0
          %345 = vmatpush1.msra.mxu0 0.0
          %346 = vmatprep.subr.mxu0 0.0
          %347 = vmatpush1.msra.mxu0 0.0
          %348 = vmatprep.subr.mxu0 0.0
          %349 = vmatpush1.msra.mxu0 0.0
          %350 = vmatprep.subr.mxu0 0.0
          %351 = vmatpush1.msra.mxu0 0.0
          %352 = vmatprep.subr.mxu0 0.0
          %353 = vmatpush1.msra.mxu0 0.0
          %354 = vmatprep.subr.mxu0 0.0
          %355 = vmatpush1.msra.mxu0 0.0
          %356 = vmatprep.subr.mxu0 0.0
          %357 = vmatpush1.msra.mxu0 0.0
          %358 = vmatprep.subr.mxu0 0.0
          %359 = vmatpush1.msra.mxu0 0.0
          %360 = vmatprep.subr.mxu0 0.0
          %361 = vmatpush1.msra.mxu0 0.0
          %362 = vmatprep.subr.mxu0 0.0
          %363 = vmatpush1.msra.mxu0 0.0
          %364 = vmatprep.subr.mxu0 0.0
          %365 = vmatpush1.msra.mxu0 0.0
          %366 = vmatprep.subr.mxu0 0.0
          %367 = vmatpush1.msra.mxu0 0.0
          %368 = vmatprep.subr.mxu0 0.0
          %369 = vmatpush1.msra.mxu0 0.0
          %370 = vmatprep.subr.mxu0 0.0
          %371 = vmatpush1.msra.mxu0 0.0
          %372 = vmatprep.subr.mxu0 0.0
          %373 = vmatpush1.msra.mxu0 0.0
          %374 = vmatprep.mubr.f32.mxu0 0.0
          %375 = vmatmul.mubr.f32.gmra.mrb[0].mxu0 %v308
          %v376 = vpop.f32.mrb[0].mxu0
          %v377 = vadd.f32 0.0, %v376
          %v378 = vpop.f32.mrb[0].mxu0
          %379 = vdwg.mxu0
          %v380 = vmax.f32 %v377, 0.0
          %v381 = vld [vmem:[%s2] sm:$0xff]
          %v382 = vld [vmem:[%s2 + $0x8] sm:$0xff]
          %v383 = vld [vmem:[%s2 + $0x10] sm:$0xff]
          %v384 = vld [vmem:[%s2 + $0x18] sm:$0xff]
          %v385 = vld [vmem:[%s2 + $0x20] sm:$0xff]
          %v386 = vld [vmem:[%s2 + $0x28] sm:$0xff]
          %v387 = vld [vmem:[%s2 + $0x30] sm:$0xff]
          %v388 = vld [vmem:[%s2 + $0x38] sm:$0xff]
          %vm389 = vcmask 31744
          %v391 = vsel %vm389, %v381, 0
          %v394 = vsel %vm389, %v382, 0
          %v397 = vsel %vm389, %v383, 0
          %v400 = vsel %vm389, %v384, 0
          %v403 = vsel %vm389, %v385, 0
          %v406 = vsel %vm389, %v386, 0
          %v409 = vsel %vm389, %v387, 0
          %v412 = vsel %vm389, %v388, 0
          %vm414 = vcmask 1043456
          %v416 = vsel %vm414, %v380, 0
          %418 = vmatprep.subr.mxu0 0.0
          %419 = vmatpush1.msra.mxu0 %v416
          %420 = vmatprep.subr.mxu0 0.0
          %421 = vmatpush1.msra.mxu0 0.0
          %422 = vmatprep.subr.mxu0 0.0
          %423 = vmatpush1.msra.mxu0 0.0
          %424 = vmatprep.subr.mxu0 0.0
          %425 = vmatpush1.msra.mxu0 0.0
          %426 = vmatprep.subr.mxu0 0.0
          %427 = vmatpush1.msra.mxu0 0.0
          %428 = vmatprep.subr.mxu0 0.0
          %429 = vmatpush1.msra.mxu0 0.0
          %430 = vmatprep.subr.mxu0 0.0
          %431 = vmatpush1.msra.mxu0 0.0
          %432 = vmatprep.subr.mxu0 0.0
          %433 = vmatpush1.msra.mxu0 0.0
          %434 = vmatprep.subr.mxu0 0.0
          %435 = vmatpush1.msra.mxu0 0.0
          %436 = vmatprep.subr.mxu0 0.0
          %437 = vmatpush1.msra.mxu0 0.0
          %438 = vmatprep.subr.mxu0 0.0
          %439 = vmatpush1.msra.mxu0 0.0
          %440 = vmatprep.subr.mxu0 0.0
          %441 = vmatpush1.msra.mxu0 0.0
          %442 = vmatprep.subr.mxu0 0.0
          %443 = vmatpush1.msra.mxu0 0.0
          %444 = vmatprep.subr.mxu0 0.0
          %445 = vmatpush1.msra.mxu0 0.0
          %446 = vmatprep.subr.mxu0 0.0
          %447 = vmatpush1.msra.mxu0 0.0
          %448 = vmatprep.subr.mxu0 0.0
          %449 = vmatpush1.msra.mxu0 0.0
          %450 = vmatprep.subr.mxu0 0.0
          %451 = vmatpush1.msra.mxu0 0.0
          %452 = vmatprep.subr.mxu0 0.0
          %453 = vmatpush1.msra.mxu0 0.0
          %454 = vmatprep.subr.mxu0 0.0
          %455 = vmatpush1.msra.mxu0 0.0
          %456 = vmatprep.subr.mxu0 0.0
          %457 = vmatpush1.msra.mxu0 0.0
          %458 = vmatprep.subr.mxu0 0.0
          %459 = vmatpush1.msra.mxu0 0.0
          %460 = vmatprep.subr.mxu0 0.0
          %461 = vmatpush1.msra.mxu0 0.0
          %462 = vmatprep.subr.mxu0 0.0
          %463 = vmatpush1.msra.mxu0 0.0
          %464 = vmatprep.subr.mxu0 0.0
          %465 = vmatpush1.msra.mxu0 0.0
          %466 = vmatprep.subr.mxu0 0.0
          %467 = vmatpush1.msra.mxu0 0.0
          %468 = vmatprep.subr.mxu0 0.0
          %469 = vmatpush1.msra.mxu0 0.0
          %470 = vmatprep.subr.mxu0 0.0
          %471 = vmatpush1.msra.mxu0 0.0
          %472 = vmatprep.subr.mxu0 0.0
          %473 = vmatpush1.msra.mxu0 0.0
          %474 = vmatprep.subr.mxu0 0.0
          %475 = vmatpush1.msra.mxu0 0.0
          %476 = vmatprep.subr.mxu0 0.0
          %477 = vmatpush1.msra.mxu0 0.0
          %478 = vmatprep.subr.mxu0 0.0
          %479 = vmatpush1.msra.mxu0 0.0
          %480 = vmatprep.subr.mxu0 0.0
          %481 = vmatpush1.msra.mxu0 0.0
          %482 = vmatprep.mubr.f32.mxu0 0.0
          %483 = vmatmul.mubr.f32.gmra.mrb[0].mxu0 %v391
          %v484 = vpop.f32.mrb[0].mxu0
          %v485 = vadd.f32 0.0, %v484
          %v486 = vpop.f32.mrb[0].mxu0
          %487 = vmatprep.mubr.f32.mxu0 0.0
          %488 = vmatmul.mubr.f32.gmra.mrb[0].mxu0 %v394
          %v489 = vpop.f32.mrb[0].mxu0
          %v490 = vadd.f32 0.0, %v489
          %v491 = vpop.f32.mrb[0].mxu0
          %492 = vmatprep.mubr.f32.mxu0 0.0
          %493 = vmatmul.mubr.f32.gmra.mrb[0].mxu0 %v397
          %v494 = vpop.f32.mrb[0].mxu0
          %v495 = vadd.f32 0.0, %v494
          %v496 = vpop.f32.mrb[0].mxu0
          %497 = vmatprep.mubr.f32.mxu0 0.0
          %498 = vmatmul.mubr.f32.gmra.mrb[0].mxu0 %v400
          %v499 = vpop.f32.mrb[0].mxu0
          %v500 = vadd.f32 0.0, %v499
          %v501 = vpop.f32.mrb[0].mxu0
          %502 = vmatprep.mubr.f32.mxu0 0.0
          %503 = vmatmul.mubr.f32.gmra.mrb[0].mxu0 %v403
          %v504 = vpop.f32.mrb[0].mxu0
          %v505 = vadd.f32 0.0, %v504
          %v506 = vpop.f32.mrb[0].mxu0
          %507 = vmatprep.mubr.f32.mxu0 0.0
          %508 = vmatmul.mubr.f32.gmra.mrb[0].mxu0 %v406
          %v509 = vpop.f32.mrb[0].mxu0
          %v510 = vadd.f32 0.0, %v509
          %v511 = vpop.f32.mrb[0].mxu0
          %512 = vmatprep.mubr.f32.mxu0 0.0
          %513 = vmatmul.mubr.f32.gmra.mrb[0].mxu0 %v409
          %v514 = vpop.f32.mrb[0].mxu0
          %v515 = vadd.f32 0.0, %v514
          %v516 = vpop.f32.mrb[0].mxu0
          %517 = vmatprep.mubr.f32.mxu0 0.0
          %518 = vmatmul.mubr.f32.gmra.mrb[0].mxu0 %v412
          %v519 = vpop.f32.mrb[0].mxu0
          %v520 = vadd.f32 0.0, %v519
          %v521 = vpop.f32.mrb[0].mxu0
          %522 = vdwg.mxu0
          %v523 = vxor.u32 %v485, 2147483648
          %v524 = vxor.u32 %v490, 2147483648
          %v525 = vxor.u32 %v495, 2147483648
          %v526 = vxor.u32 %v500, 2147483648
          %v527 = vxor.u32 %v505, 2147483648
          %v528 = vxor.u32 %v510, 2147483648
          %v529 = vxor.u32 %v515, 2147483648
          %v530 = vxor.u32 %v520, 2147483648
          %v531 = vmul.f32 %v523, 1.442695
          %v532 = vpow.pop %v531
          %v533 = vmul.f32 %v524, 1.442695
          %v534 = vpow.pop %v533
          %v535 = vmul.f32 %v525, 1.442695
          %v536 = vpow.pop %v535
          %v537 = vmul.f32 %v526, 1.442695
          %v538 = vpow.pop %v537
          %v539 = vmul.f32 %v527, 1.442695
          %v540 = vpow.pop %v539
          %v541 = vmul.f32 %v528, 1.442695
          %v542 = vpow.pop %v541
          %v543 = vmul.f32 %v529, 1.442695
          %v544 = vpow.pop %v543
          %v545 = vmul.f32 %v530, 1.442695
          %v546 = vpow.pop %v545
          %v547 = vadd.f32 %v532, 1.0
          %v548 = vadd.f32 %v534, 1.0
          %v549 = vadd.f32 %v536, 1.0
          %v550 = vadd.f32 %v538, 1.0
          %v551 = vadd.f32 %v540, 1.0
          %v552 = vadd.f32 %v542, 1.0
          %v553 = vadd.f32 %v544, 1.0
          %v554 = vadd.f32 %v546, 1.0
          %v555 = vrcp.pop %v547
          %v556 = vmul.f32 1.0, %v555
          %v557 = vrcp.pop %v548
          %v558 = vmul.f32 1.0, %v557
          %v559 = vrcp.pop %v549
          %v560 = vmul.f32 1.0, %v559
          %v561 = vrcp.pop %v550
          %v562 = vmul.f32 1.0, %v561
          %v563 = vrcp.pop %v551
          %v564 = vmul.f32 1.0, %v563
          %v565 = vrcp.pop %v552
          %v566 = vmul.f32 1.0, %v565
          %v567 = vrcp.pop %v553
          %v568 = vmul.f32 1.0, %v567
          %v569 = vrcp.pop %v554
          %v570 = vmul.f32 1.0, %v569
          %571 = vst.msk [vmem:[%s207] sm:$0xff] %vm277, %v556
          %572 = vst.msk [vmem:[%s207 + $0x8] sm:$0xff] %vm277, %v558
          %573 = vst.msk [vmem:[%s207 + $0x10] sm:$0xff] %vm277, %v560
          %574 = vst.msk [vmem:[%s207 + $0x18] sm:$0xff] %vm277, %v562
          %575 = vst.msk [vmem:[%s207 + $0x20] sm:$0xff] %vm277, %v564
          %576 = vst.msk [vmem:[%s207 + $0x28] sm:$0xff] %vm277, %v566
          %577 = vst.msk [vmem:[%s207 + $0x30] sm:$0xff] %vm277, %v568
          %578 = vst.msk [vmem:[%s207 + $0x38] sm:$0xff] %vm277, %v570
        $region44: #{tpu_custom_call.1} parent=31 // pred_fallthru
          _
        %p579 = scmp.lt.s32.totalorder %s21, 1
        %s580 = scalar_select %p579, %s21, 1
        %s581 = smul.addr %s580, 8
        %s582 = smul.addr %s581, 8
        %s583 = scalar_lea.vmem %s3, %s582
        // Predicated region
        $region45: #{tpu_custom_call.1} parent=31 // pred_check
          %p584 = pneg %p117
        $region46: #{tpu_custom_call.1} parent=31 // pred_check_branch
          %586 = sbr.rel (%p584) target = $region48
        $region47: #{tpu_custom_call.1} parent=31 // pred_region
          _
        $region48: #{tpu_custom_call.1} parent=31 // pred_fallthru
          _
      $region32: #{tpu_custom_call.1} parent=5 // pred_fallthru
        _
      %p587 = scmp.le.s32.totalorder 2, %s12
      // Predicated region
      $region49: #{tpu_custom_call.1} parent=5 // pred_check
        %p588 = pneg %p587
      $region50: #{tpu_custom_call.1} parent=5 // pred_check_branch
        %590 = sbr.rel (%p588) target = $region52
      $region51: #{tpu_custom_call.1} parent=5 // pred_region
        %s591 = ssub.s32 %s12, 2
        // Predicated region
        $region53: #{tpu_custom_call.1} parent=51 // pred_check
          %p592 = pneg %p123
        $region54: #{tpu_custom_call.1} parent=51 // pred_check_branch
          %594 = sbr.rel (%p592) target = $region56
        $region55: #{tpu_custom_call.1} parent=51 // pred_region
          %p595 = scmp.lt.s32.totalorder %s23, 1
          %s596 = scalar_select %p595, %s23, 1
          %s597 = smul.addr %s596, 8
          %s598 = smul.addr %s597, 8
          %s599 = scalar_lea.vmem %s3, %s598
        $region56: #{tpu_custom_call.1} parent=51 // pred_fallthru
          _
      $region52: #{tpu_custom_call.1} parent=5 // pred_fallthru
        _
    $region6: #{tpu_custom_call.1} parent=1 // loop_footer
      %s16 = sadd.s32 1, %s12
    $region7: #{tpu_custom_call.1} parent=1 // loop_footer_branch
      %11 = sbr.rel target = $region3
    $region8: #{tpu_custom_call.1} parent=1 // loop_exit
      _
    %600 = vsyncpa [#allocation4], 1
    %s601 = scalar_lea.sflag [#allocation4], 1
    %602 = vsyncpa %s601, 1

</llo_original>
